<compile_context>
chip_gen: v6e
topology: v6e:2x2x1
jax: 0.10.0
libtpu: 0.0.40
codegen_flags: <defaults>
</compile_context>

<pallas_src>
import functools

import jax
import jax.numpy as jnp
from jax import lax
from jax.experimental import pallas as pl
from jax.experimental.pallas import tpu as pltpu

_VMEM_LIMIT = 32 * 1024 * 1024        # fits v7x's 64 MiB VMEM with headroom


def _round_up(x, m):
    return ((x + m - 1) // m) * m


def _mosaic_params(*semantics):
    return pltpu.CompilerParams(dimension_semantics=tuple(semantics),
                                vmem_limit_bytes=_VMEM_LIMIT)


# ---------------------------------------------------------------------------
# Pallas kernels
# ---------------------------------------------------------------------------
def _matmul_kernel(*refs, has_bias, has_res):
    # refs = (a, b, [bias], [residual], out, acc_scratch)
    a_ref, b_ref = refs[0], refs[1]
    idx = 2
    bias_ref = refs[idx] if has_bias else None
    idx += int(has_bias)
    res_ref = refs[idx] if has_res else None
    idx += int(has_res)
    o_ref, acc_ref = refs[idx], refs[idx + 1]

    k = pl.program_id(2)

    @pl.when(k == 0)
    def _init():
        acc_ref[...] = jnp.zeros_like(acc_ref)

    acc_ref[...] += jnp.dot(a_ref[...], b_ref[...],
                            preferred_element_type=jnp.float32)

    @pl.when(k == pl.num_programs(2) - 1)
    def _store():
        r = acc_ref[...]
        if has_bias:
            r = r + bias_ref[...]
        if has_res:                      # fused residual add (bf16 operand)
            r = r + res_ref[...].astype(jnp.float32)
        o_ref[...] = r.astype(o_ref.dtype)


def _conv_direct_kernel(x_ref, w_ref, o_ref, acc_ref, *, kh, kw, th, wo, cin):
    # Stride-1 KhxKw conv, M-tiled over output rows.
    #   x_ref  : (1, hp, wp, cin) padded sample, resident across cout/row tiles
    #   w_ref  : (kh*kw*cin, tn)  bf16 weight tile
    #   o_ref  : (1, th, wo, tn)
    #   acc_ref: (th*wo, tn) f32 VMEM scratch
    # kx taps are folded into the contraction: per ky one dot of depth kw*cin.
    t = pl.program_id(2)
    row0 = t * th
    tapk = kw * cin
    tn = o_ref.shape[-1]
    for ky in range(kh):
        win = x_ref[0, pl.ds(row0 + ky, th), :, :]            # (th, wp, cin)
        a = jnp.concatenate([win[:, kx:kx + wo, :] for kx in range(kw)],
                            axis=-1)                           # (th, wo, kw*cin)
        a = a.reshape(th * wo, tapk)                           # wo % 8 == 0
        part = jnp.dot(a, w_ref[pl.ds(ky * tapk, tapk), :],
                       preferred_element_type=jnp.float32)
        if ky == 0:
            acc_ref[...] = part
        else:
            acc_ref[...] += part
    o_ref[0] = acc_ref[...].reshape(th, wo, tn).astype(o_ref.dtype)


def _wstd_kernel(w_ref, o_ref):
    # StdConv2d: per-output-channel standardization, biased var, eps=1e-10.
    w = w_ref[...]
    m = jnp.mean(w, axis=1, keepdims=True)
    v = jnp.mean((w - m) * (w - m), axis=1, keepdims=True)
    o_ref[...] = (w - m) / jnp.sqrt(v + 1e-10)


def _gn_scale_shift(s, ss, gamma, beta, cg, gc, eps, inv_cnt):
    # s, ss: (1, C) per-channel sum / sum-of-squares.  cg: (C, G) one-hot group
    # membership, gc = cg^T.  The group reduce + broadcast-back run as tiny MXU
    # dots so the whole GN glue lives in-kernel.
    sg = jnp.dot(s, cg, preferred_element_type=jnp.float32)        # (1, G)
    ssg = jnp.dot(ss, cg, preferred_element_type=jnp.float32)
    mean_g = sg * inv_cnt
    var_g = jnp.maximum(ssg * inv_cnt - mean_g * mean_g, 0.0)
    inv_g = lax.rsqrt(var_g + eps)
    mean_c = jnp.dot(mean_g, gc, preferred_element_type=jnp.float32)  # (1, C)
    inv_c = jnp.dot(inv_g, gc, preferred_element_type=jnp.float32)
    scale = inv_c * gamma
    shift = beta - mean_c * scale
    return scale, shift


def _gn_fused_kernel(x_ref, g_ref, b_ref, cg_ref, gc_ref, o_ref,
                     *, eps, relu, inv_cnt):
    # Single-pass GroupNorm (+ optional ReLU): one HBM read + one write.
    x = x_ref[0].astype(jnp.float32)                               # (hw, c)
    s = jnp.sum(x, axis=0, keepdims=True)
    ss = jnp.sum(x * x, axis=0, keepdims=True)
    scale, shift = _gn_scale_shift(s, ss, g_ref[...], b_ref[...],
                                   cg_ref[...], gc_ref[...], eps, inv_cnt)
    y = x * scale + shift
    if relu:
        y = jnp.maximum(y, 0.0)
    o_ref[0] = y.astype(o_ref.dtype)


def _gn_stats_kernel(x_ref, s_ref, ss_ref):
    # Pass 1 (large HW only): per-sample per-channel sum / sumsq, accumulated
    # across HW tiles (output block resident across the 'arbitrary' axis).
    @pl.when(pl.program_id(1) == 0)
    def _init():
        s_ref[...] = jnp.zeros_like(s_ref)
        ss_ref[...] = jnp.zeros_like(ss_ref)

    x = x_ref[0].astype(jnp.float32)
    s_ref[0] += jnp.sum(x, axis=0, keepdims=True)
    ss_ref[0] += jnp.sum(x * x, axis=0, keepdims=True)


def _gn_norm_kernel(x_ref, s_ref, ss_ref, g_ref, b_ref, cg_ref, gc_ref, o_ref,
                    *, eps, relu, inv_cnt):
    # Pass 2 (large HW only): glue (group reduce, rsqrt, affine) is in-kernel.
    scale, shift = _gn_scale_shift(s_ref[0], ss_ref[0], g_ref[...], b_ref[...],
                                   cg_ref[...], gc_ref[...], eps, inv_cnt)
    y = x_ref[0].astype(jnp.float32) * scale + shift
    if relu:
        y = jnp.maximum(y, 0.0)
    o_ref[0] = y.astype(o_ref.dtype)


def _avgpool_kernel(x_ref, o_ref):
    o_ref[...] = jnp.mean(x_ref[...].astype(jnp.float32), axis=1, keepdims=True)


# ---------------------------------------------------------------------------
# Pallas-call wrappers
# ---------------------------------------------------------------------------
def matmul_pallas(a, b, bias=None, residual=None, out_dtype=jnp.bfloat16):
    """(M, K) @ (K, Np) with bf16 operands, f32 accumulation, tiled K axis.

    `b` is a prepared weight: bf16, columns already padded so Np % 128 == 0.
    `residual` (optional) is added in the epilogue in f32 (operand kept bf16).
    Returns (M, Np); the caller slices the valid columns.
    """
    M, K = a.shape
    Kb, Np = b.shape
    assert K == Kb and Np % 128 == 0

    if M >= 256:
        tm = 256
        Mp = _round_up(M, tm)
    else:
        tm = max(_round_up(M, 8), 8)
        Mp = tm
    tn = 256 if Np % 256 == 0 else 128
    if K <= 1024:
        tk, Kp = K, K                       # single K block (full-dim blocks)
    else:
        Kp = _round_up(K, 128)
        tk = 128
        for cand in (512, 384, 256):
            if Kp % cand == 0:
                tk = cand
                break
    nk = Kp // tk

    a = a.astype(jnp.bfloat16)
    if Mp != M or Kp != K:
        a = jnp.pad(a, ((0, Mp - M), (0, Kp - K)))
    if Kp != K:
        b = jnp.pad(b, ((0, Kp - K), (0, 0)))

    in_specs = [pl.BlockSpec((tm, tk), lambda i, j, k: (i, k)),
                pl.BlockSpec((tk, tn), lambda i, j, k: (k, j))]
    args = [a, b]
    if bias is not None:
        b2 = bias.reshape(1, -1).astype(jnp.float32)
        if b2.shape[1] != Np:
            b2 = jnp.pad(b2, ((0, 0), (0, Np - b2.shape[1])))
        in_specs.append(pl.BlockSpec((1, tn), lambda i, j, k: (0, j)))
        args.append(b2)
    if residual is not None:
        r = residual                                   # keep bf16 (HBM traffic)
        if r.shape[0] != Mp or r.shape[1] != Np:
            r = jnp.pad(r, ((0, Mp - r.shape[0]), (0, Np - r.shape[1])))
        in_specs.append(pl.BlockSpec((tm, tn), lambda i, j, k: (i, j)))
        args.append(r)

    kern = functools.partial(_matmul_kernel,
                             has_bias=bias is not None,
                             has_res=residual is not None)
    out = pl.pallas_call(
        kern,
        out_shape=jax.ShapeDtypeStruct((Mp, Np), out_dtype),
        grid=(Mp // tm, Np // tn, nk),
        in_specs=in_specs,
        out_specs=pl.BlockSpec((tm, tn), lambda i, j, k: (i, j)),
        scratch_shapes=[pltpu.VMEM((tm, tn), jnp.float32)],
        compiler_params=_mosaic_params("parallel", "parallel", "arbitrary"),
    )(*args)
    return out[:M]


def standardize_weight_pallas(w_oihw):
    cout, cin, kh, kw = w_oihw.shape
    kk = cin * kh * kw
    w2 = w_oihw.reshape(cout, kk).astype(jnp.float32)
    rb = 64 if cout % 64 == 0 else cout
    out = pl.pallas_call(
        _wstd_kernel,
        out_shape=jax.ShapeDtypeStruct((cout, kk), jnp.float32),
        grid=(cout // rb,),
        in_specs=[pl.BlockSpec((rb, kk), lambda i: (i, 0))],
        out_specs=pl.BlockSpec((rb, kk), lambda i: (i, 0)),
        compiler_params=_mosaic_params("parallel"),
    )(w2)
    return out.reshape(cout, cin, kh, kw)


def _prep_conv(w_oihw, standardize=True):
    """Once-per-weight prep: (optional) weight standardization, reshape to a
    (Kh*Kw*Cin, Cout) matmul operand, pad Cout to a multiple of 128, bf16."""
    cout, cin, kh, kw = w_oihw.shape
    w = standardize_weight_pallas(w_oihw) if standardize else w_oihw.astype(jnp.float32)
    wmat = jnp.transpose(w, (2, 3, 1, 0)).reshape(kh * kw * cin, cout)
    coutp = _round_up(cout, 128)
    if coutp != cout:
        wmat = jnp.pad(wmat, ((0, 0), (0, coutp - cout)))
    return {'w': wmat.astype(jnp.bfloat16), 'cout': cout,
            'cin': cin, 'kh': kh, 'kw': kw}


def conv1x1_pallas(x, pw, stride=1, bias=None, residual=None,
                   out_dtype=jnp.bfloat16):
    if stride > 1:
        x = x[:, ::stride, ::stride, :]
    n, h, w_, c = x.shape
    a = x.reshape(n * h * w_, c)
    res2 = None
    if residual is not None:
        res2 = residual.reshape(n * h * w_, pw['cout'])
    out = matmul_pallas(a, pw['w'], bias=bias, residual=res2,
                        out_dtype=out_dtype)
    return out[:, :pw['cout']].reshape(n, h, w_, pw['cout'])


def conv_spatial_pallas(x, pw, stride, padding, out_dtype=jnp.bfloat16):
    """KhxKw conv.  stride==1 -> fused direct kernel (row-tiled, VMEM f32
    accumulator, kx folded into the contraction); stride>1 -> bf16 im2col
    fallback feeding the tiled matmul kernel."""
    n, h, w_, cin = x.shape
    kh, kw, cout = pw['kh'], pw['kw'], pw['cout']
    coutp = pw['w'].shape[1]
    ho = (h + 2 * padding - kh) // stride + 1
    wo = (w_ + 2 * padding - kw) // stride + 1

    if stride == 1:
        wo_p = _round_up(wo, 8)                     # sublane-friendly width
        th = max(1, min(ho, 512 // max(wo_p, 1)))   # ~<=512 output rows / tile
        ho_p = _round_up(ho, th)
        hp, wp = ho_p + kh - 1, wo_p + kw - 1
        xp = jnp.pad(x.astype(jnp.bfloat16),
                     ((0, 0), (padding, hp - h - padding),
                      (padding, wp - w_ - padding), (0, 0)))
        tn = 256 if coutp % 256 == 0 else 128
        kern = functools.partial(_conv_direct_kernel, kh=kh, kw=kw, th=th,
                                 wo=wo_p, cin=cin)
        out = pl.pallas_call(
            kern,
            out_shape=jax.ShapeDtypeStruct((n, ho_p, wo_p, coutp), out_dtype),
            grid=(n, coutp // tn, ho_p // th),
            in_specs=[pl.BlockSpec((1, hp, wp, cin),
                                   lambda b, j, t: (b, 0, 0, 0)),
                      pl.BlockSpec((kh * kw * cin, tn),
                                   lambda b, j, t: (0, j))],
            out_specs=pl.BlockSpec((1, th, wo_p, tn),
                                   lambda b, j, t: (b, t, 0, j)),
            scratch_shapes=[pltpu.VMEM((th * wo_p, tn), jnp.float32)],
            compiler_params=_mosaic_params("parallel", "parallel", "arbitrary"),
        )(xp, pw['w'])
        return out[:, :ho, :wo, :cout]

    # TODO(synk): strided-window blocks are not BlockSpec-expressible; replace
    # this bf16 im2col round trip with in-kernel strided pl.ds / phase decomp
    # (only the root 7x7/s2 and the 3 transition 3x3/s2 convs take this path).
    xp = jnp.pad(x.astype(jnp.bfloat16),
                 ((0, 0), (padding, padding), (padding, padding), (0, 0)))
    cols = []
    for ky in range(kh):
        for kx in range(kw):
            cols.append(xp[:, ky:ky + (ho - 1) * stride + 1:stride,
                           kx:kx + (wo - 1) * stride + 1:stride, :])
    patches = jnp.stack(cols, axis=3).reshape(n * ho * wo, kh * kw * cin)
    out = matmul_pallas(patches, pw['w'], out_dtype=out_dtype)
    return out[:, :cout].reshape(n, ho, wo, cout)


def group_norm_pallas(x, gamma, beta, num_groups=32, eps=1e-5, relu=False,
                      out_dtype=jnp.bfloat16):
    """GroupNorm (+ optional fused ReLU).  Fully fused single pass when a
    sample's (HW, C) slab is small; two-pass HW-tiled otherwise (glue in-kernel)."""
    n, h, w_, c = x.shape
    hw = h * w_
    cg = c // num_groups
    x2 = x.reshape(n, hw, c)
    gamma2 = gamma.reshape(1, c).astype(jnp.float32)
    beta2 = beta.reshape(1, c).astype(jnp.float32)
    # one-hot group membership matrices (channel->group and group->channel)
    ch_g = lax.broadcasted_iota(jnp.int32, (c, num_groups), 0) // cg
    g_id = lax.broadcasted_iota(jnp.int32, (c, num_groups), 1)
    grp_cg = (ch_g == g_id).astype(jnp.float32)          # (C, G)
    grp_gc = jnp.transpose(grp_cg)                        # (G, C)
    inv_cnt = 1.0 / float(hw * cg)

    if hw * c * 4 <= 2 * 1024 * 1024:                     # fused single pass
        y = pl.pallas_call(
            functools.partial(_gn_fused_kernel, eps=eps, relu=relu,
                              inv_cnt=inv_cnt),
            out_shape=jax.ShapeDtypeStruct((n, hw, c), out_dtype),
            grid=(n,),
            in_specs=[pl.BlockSpec((1, hw, c), lambda i: (i, 0, 0)),
                      pl.BlockSpec((1, c), lambda i: (0, 0)),
                      pl.BlockSpec((1, c), lambda i: (0, 0)),
                      pl.BlockSpec((c, num_groups), lambda i: (0, 0)),
                      pl.BlockSpec((num_groups, c), lambda i: (0, 0))],
            out_specs=pl.BlockSpec((1, hw, c), lambda i: (i, 0, 0)),
            compiler_params=_mosaic_params("parallel"),
        )(x2, gamma2, beta2, grp_cg, grp_gc)
        return y.reshape(n, h, w_, c)

    # ---- two-pass path for large HW ----
    thw = 512
    hwp = _round_up(hw, thw)
    if hwp != hw:
        x2 = jnp.pad(x2, ((0, 0), (0, hwp - hw), (0, 0)))
    nt = hwp // thw

    s, ss = pl.pallas_call(
        _gn_stats_kernel,
        out_shape=(jax.ShapeDtypeStruct((n, 1, c), jnp.float32),
                   jax.ShapeDtypeStruct((n, 1, c), jnp.float32)),
        grid=(n, nt),
        in_specs=[pl.BlockSpec((1, thw, c), lambda i, t: (i, t, 0))],
        out_specs=(pl.BlockSpec((1, 1, c), lambda i, t: (i, 0, 0)),
                   pl.BlockSpec((1, 1, c), lambda i, t: (i, 0, 0))),
        compiler_params=_mosaic_params("parallel", "arbitrary"),
    )(x2)

    y = pl.pallas_call(
        functools.partial(_gn_norm_kernel, eps=eps, relu=relu, inv_cnt=inv_cnt),
        out_shape=jax.ShapeDtypeStruct((n, hwp, c), out_dtype),
        grid=(n, nt),
        in_specs=[pl.BlockSpec((1, thw, c), lambda i, t: (i, t, 0)),
                  pl.BlockSpec((1, 1, c), lambda i, t: (i, 0, 0)),
                  pl.BlockSpec((1, 1, c), lambda i, t: (i, 0, 0)),
                  pl.BlockSpec((1, c), lambda i, t: (0, 0)),
                  pl.BlockSpec((1, c), lambda i, t: (0, 0)),
                  pl.BlockSpec((c, num_groups), lambda i, t: (0, 0)),
                  pl.BlockSpec((num_groups, c), lambda i, t: (0, 0))],
        out_specs=pl.BlockSpec((1, thw, c), lambda i, t: (i, t, 0)),
        compiler_params=_mosaic_params("parallel", "parallel"),
    )(x2, s, ss, gamma2, beta2, grp_cg, grp_gc)
    return y[:, :hw].reshape(n, h, w_, c)


def maxpool3x3s2(x):
    # ConstantPad2d(1, 0) + MaxPool2d(3, 2): pairwise maximum over the nine
    # strided views (XLA fuses; no 9x stacked HBM tensor), runs in bf16.
    n, h, w_, c = x.shape
    xp = jnp.pad(x, ((0, 0), (1, 1), (1, 1), (0, 0)))
    ho = (h + 2 - 3) // 2 + 1
    wo = (w_ + 2 - 3) // 2 + 1
    out = None
    for dy in range(3):
        for dx in range(3):
            v = xp[:, dy:dy + 2 * (ho - 1) + 1:2,
                   dx:dx + 2 * (wo - 1) + 1:2, :]
            out = v if out is None else jnp.maximum(out, v)
    return out


def global_avgpool_pallas(x):
    n, h, w_, c = x.shape
    x2 = x.reshape(n, h * w_, c)
    out = pl.pallas_call(
        _avgpool_kernel,
        out_shape=jax.ShapeDtypeStruct((n, 1, c), jnp.float32),
        grid=(n,),
        in_specs=[pl.BlockSpec((1, h * w_, c), lambda i: (i, 0, 0))],
        out_specs=pl.BlockSpec((1, 1, c), lambda i: (i, 0, 0)),
        compiler_params=_mosaic_params("parallel"),
    )(x2)
    return out.reshape(n, c)


# ---------------------------------------------------------------------------
# Model: parameters, one-time prep, forward
# ---------------------------------------------------------------------------
def init_resnetv2_params(key, block_units, width_factor, head_size):
    wf = width_factor

    def conv_w(k, cout, cin, ksz):
        return jax.random.normal(k, (cout, cin, ksz, ksz), jnp.float32) * 0.05

    def gn_p(k, c):
        k1, k2 = jax.random.split(k)
        gamma = 1.0 + 0.02 * jax.random.normal(k1, (c,), jnp.float32)
        beta = 0.02 * jax.random.normal(k2, (c,), jnp.float32)
        return gamma, beta

    keys = iter(jax.random.split(key, 1024))
    params = {'root_w': conv_w(next(keys), 64 * wf, 3, 7)}

    block_cfg = [
        (64 * wf, 256 * wf, 64 * wf, 1),
        (256 * wf, 512 * wf, 128 * wf, 2),
        (512 * wf, 1024 * wf, 256 * wf, 2),
        (1024 * wf, 2048 * wf, 512 * wf, 2),
    ]
    blocks = []
    for bi, (cin0, cout, cmid, stride0) in enumerate(block_cfg):
        units = []
        for ui in range(block_units[bi]):
            cin = cin0 if ui == 0 else cout
            stride = stride0 if ui == 0 else 1
            u = {'stride': stride}
            u['gn1_g'], u['gn1_b'] = gn_p(next(keys), cin)
            u['conv1_w'] = conv_w(next(keys), cmid, cin, 1)
            u['gn2_g'], u['gn2_b'] = gn_p(next(keys), cmid)
            u['conv2_w'] = conv_w(next(keys), cmid, cmid, 3)
            u['gn3_g'], u['gn3_b'] = gn_p(next(keys), cmid)
            u['conv3_w'] = conv_w(next(keys), cout, cmid, 1)
            if stride != 1 or cin != cout:
                u['down_w'] = conv_w(next(keys), cout, cin, 1)
            units.append(u)
        blocks.append(units)
    params['blocks'] = blocks

    c_head = 2048 * wf
    params['head_gn_g'], params['head_gn_b'] = gn_p(next(keys), c_head)
    params['head_conv_w'] = conv_w(next(keys), head_size, c_head, 1)
    params['head_conv_b'] = 0.02 * jax.random.normal(next(keys), (head_size,),
                                                     jnp.float32)
    return params


def prepare_params(params):
    """One-time weight prep (standardization + matmul layout + bf16)."""
    prep = {'root': _prep_conv(params['root_w'], standardize=True)}
    blocks = []
    for block in params['blocks']:
        units = []
        for u in block:
            pu = {'stride': u['stride'],
                  'gn1': (u['gn1_g'], u['gn1_b']),
                  'gn2': (u['gn2_g'], u['gn2_b']),
                  'gn3': (u['gn3_g'], u['gn3_b']),
                  'conv1': _prep_conv(u['conv1_w']),
                  'conv2': _prep_conv(u['conv2_w']),
                  'conv3': _prep_conv(u['conv3_w'])}
            if 'down_w' in u:
                pu['down'] = _prep_conv(u['down_w'])
            units.append(pu)
        blocks.append(units)
    prep['blocks'] = blocks
    prep['head_gn'] = (params['head_gn_g'], params['head_gn_b'])
    prep['head'] = _prep_conv(params['head_conv_w'], standardize=False)
    prep['head_b'] = params['head_conv_b'].astype(jnp.float32)
    return prep


def preact_bottleneck_forward(x, u):
    stride = u['stride']
    pre = group_norm_pallas(x, *u['gn1'], relu=True, out_dtype=jnp.bfloat16)
    residual = x                                           # bf16 trunk
    if 'down' in u:
        residual = conv1x1_pallas(pre, u['down'], stride=stride,
                                  out_dtype=jnp.bfloat16)
    out = conv1x1_pallas(pre, u['conv1'], out_dtype=jnp.bfloat16)
    out = group_norm_pallas(out, *u['gn2'], relu=True, out_dtype=jnp.bfloat16)
    out = conv_spatial_pallas(out, u['conv2'], stride=stride, padding=1,
                              out_dtype=jnp.bfloat16)
    out = group_norm_pallas(out, *u['gn3'], relu=True, out_dtype=jnp.bfloat16)
    # conv3 with the residual add fused into the matmul epilogue (bf16 trunk).
    return conv1x1_pallas(out, u['conv3'], residual=residual,
                          out_dtype=jnp.bfloat16)


def resnetv2_forward(prep, x_nchw):
    # input accepted as NCHW (PyTorch convention), converted to NHWC internally
    x = jnp.transpose(x_nchw, (0, 2, 3, 1)).astype(jnp.float32)
    # root: StdConv2d(3, 64*wf, 7, s=2, p=3) -> ConstantPad2d(1,0) -> MaxPool2d(3,2)
    x = conv_spatial_pallas(x, prep['root'], stride=2, padding=3,
                            out_dtype=jnp.bfloat16)
    x = maxpool3x3s2(x)
    # body
    for block in prep['blocks']:
        for unit in block:
            x = preact_bottleneck_forward(x, unit)
    # head: GroupNorm -> ReLU -> global avg pool -> 1x1 conv (bias)
    x = group_norm_pallas(x, *prep['head_gn'], relu=True,
                          out_dtype=jnp.float32)
    x = global_avgpool_pallas(x)                                   # (N, C)
    logits = matmul_pallas(x, prep['head']['w'], bias=prep['head_b'],
                           out_dtype=jnp.float32)
    return logits[:, :prep['head']['cout']]                        # (N, head)


if __name__ == "__main__":
    key = jax.random.PRNGKey(0)
    kp, kx = jax.random.split(key)

    block_units = (1, 1, 1, 1)   # one PreActBottleneck per stage (small config)
    width_factor = 1
    head_size = 64

    params = init_resnetv2_params(kp, block_units, width_factor, head_size)
    prep = prepare_params(params)                 # weight prep runs once
    x = jax.random.normal(kx, (2, 3, 32, 32), jnp.float32)   # NCHW input

    fwd = jax.jit(lambda inp: resnetv2_forward(prep, inp))
    out = fwd(x)
    out = jax.block_until_ready(out)
    assert out.shape == (2, head_size), out.shape
    assert bool(jnp.all(jnp.isfinite(out)))
    print("KERNEL_OK")
</pallas_src>

<mosaic_0001>
module attributes {stable_mosaic.version = 11 : i64} {
  func.func @_wstd_kernel(%arg0: i32, %arg1: memref<64x147xf32, #tpu.memory_space<vmem>>, %arg2: memref<64x147xf32, #tpu.memory_space<vmem>>) attributes {dimension_semantics = [#tpu.dimension_semantics<parallel>], iteration_bounds = array<i64: 1>, scalar_prefetch = 0 : i64, scratch_operands = 0 : i64, tpu.core_type = #tpu.core_type<tc>, window_params = [{transform_indices = @transform_0, window_bounds = array<i64: 64, 147>}, {transform_indices = @transform_1, window_bounds = array<i64: 64, 147>}]} {
    %c0 = arith.constant 0 : index
    %c0_0 = arith.constant 0 : index
    %0 = vector.load %arg1[%c0, %c0_0] : memref<64x147xf32, #tpu.memory_space<vmem>>, vector<64x147xf32>
    %cst = arith.constant dense<0.000000e+00> : vector<64xf32>
    %1 = vector.multi_reduction <add>, %0, %cst [1] : vector<64x147xf32> to vector<64xf32>
    %2 = vector.shape_cast %1 : vector<64xf32> to vector<64x1xf32>
    %cst_1 = arith.constant 1.470000e+02 : f32
    %3 = vector.broadcast %cst_1 : f32 to vector<64x1xf32>
    %4 = arith.divf %2, %3 : vector<64x1xf32>
    %5 = vector.broadcast %4 : vector<64x1xf32> to vector<64x147xf32>
    %6 = arith.subf %0, %5 : vector<64x147xf32>
    %7 = vector.broadcast %4 : vector<64x1xf32> to vector<64x147xf32>
    %8 = arith.subf %0, %7 : vector<64x147xf32>
    %9 = arith.mulf %6, %8 : vector<64x147xf32>
    %cst_2 = arith.constant dense<0.000000e+00> : vector<64xf32>
    %10 = vector.multi_reduction <add>, %9, %cst_2 [1] : vector<64x147xf32> to vector<64xf32>
    %11 = vector.shape_cast %10 : vector<64xf32> to vector<64x1xf32>
    %cst_3 = arith.constant 1.470000e+02 : f32
    %12 = vector.broadcast %cst_3 : f32 to vector<64x1xf32>
    %13 = arith.divf %11, %12 : vector<64x1xf32>
    %14 = vector.broadcast %4 : vector<64x1xf32> to vector<64x147xf32>
    %15 = arith.subf %0, %14 : vector<64x147xf32>
    %cst_4 = arith.constant 1.000000e-10 : f32
    %16 = vector.broadcast %cst_4 : f32 to vector<64x1xf32>
    %17 = arith.addf %13, %16 : vector<64x1xf32>
    %18 = math.sqrt %17 : vector<64x1xf32>
    %19 = vector.broadcast %18 : vector<64x1xf32> to vector<64x147xf32>
    %20 = arith.divf %15, %19 : vector<64x147xf32>
    %c0_5 = arith.constant 0 : index
    %c0_6 = arith.constant 0 : index
    %21 = vector.load %arg2[%c0_5, %c0_6] : memref<64x147xf32, #tpu.memory_space<vmem>>, vector<64x147xf32>
    tpu.vector_store %arg2[%c0_5, %c0_6], %20 {strides = array<i32>} : memref<64x147xf32, #tpu.memory_space<vmem>>, vector<64x147xf32>,
    return
  }
  func.func @transform_0(%arg0: i32) -> (i32, i32) {
    %c0_i32 = arith.constant 0 : i32
    %c0_i32_0 = arith.constant 0 : i32
    return %arg0, %c0_i32 : i32, i32
  }
  func.func @transform_1(%arg0: i32) -> (i32, i32) {
    %c0_i32 = arith.constant 0 : i32
    %c0_i32_0 = arith.constant 0 : i32
    return %arg0, %c0_i32 : i32, i32
  }
}

</mosaic_0001>

<llo_original>
// kernel: tpu_custom_call.1
$region0: #{tpu_custom_call.1}
  #allocation0 [shape = 'u32[]', space=smem, size = 0x4, offset = 0x4, fixed_abs, tag = 'smem constant byte address 0x4 - core index']
  #allocation1 [shape = 'u32[144,128]{1,0:T(1,128)}', space=vmem, size = 0x12000, scoped, tag = 'internal scratch']
  %s0 = inlined_call_operand.hbm [shape: f32[64,147], index: 0, kind: input, shape index: {}]
  %s1 = inlined_call_operand.hbm [shape: f32[64,147], index: 1, kind: output, shape index: {}]
  %s2 = sld [smem:[#allocation0]]
  $region18: #{tpu_custom_call.1} parent=0
    _
  %s4 = ssub.s32 1, %s2
  %s5 = scalar_select 0, %s4, %s2
  $region1: #{tpu_custom_call.1} parent=0
    #allocation2 [shape = 'u8[65536]{0}', space=vmem, size = 0x10000, scoped, tag = 'input window, operand 0, single buffered']
    #allocation3 [shape = 's32[1]{0}', space=sflag, size = 0x4, scoped, tag = 'scoped memory for tpu_custom_call.1']
    #allocation4 [shape = 's32[1]{0}', space=sflag, size = 0x4, scoped, tag = 'scoped memory for tpu_custom_call.1']
    #allocation5 [shape = 'u8[65536]{0}', space=vmem, size = 0x10000, scoped, tag = 'output window, operand 0, single buffered']
    %6 = vsyncpa [#allocation3], 0
    %7 = vsyncpa [#allocation4], 0
    // Predicated region
    $region2: #{tpu_custom_call.1} parent=1 // pred_check
      _
    $region3: #{tpu_custom_call.1} parent=1 // pred_check_branch
      %9 = sbr.rel (0) target = $region5
    $region4: #{tpu_custom_call.1} parent=1 // pred_region
      %s11 = ssub.s32 2048, 2048
      %12 = vsyncadd [#allocation3], %s11
      %s13 = sshll.u32 [#allocation2], 4
      %s14 = int_to_ptr.vmem [resolvable:$true] %s13
      %19 = dma.hbm_to_vmem [thread:$0]  %s0, 2048, %s14, [#allocation3], 256, 256, 16
    $region5: #{tpu_custom_call.1} parent=1 // pred_fallthru
      _
    // Predicated region
    $region6: #{tpu_custom_call.1} parent=1 // pred_check
      _
    $region7: #{tpu_custom_call.1} parent=1 // pred_check_branch
      %21 = sbr.rel (0) target = $region9
    $region8: #{tpu_custom_call.1} parent=1 // pred_region
      %22 = dma.done [#allocation3], 2048
    $region9: #{tpu_custom_call.1} parent=1 // pred_fallthru
      _
    %v23 = vld [vmem:[#allocation2] sm:$0xff]
    %v24 = vld [vmem:[#allocation2 + $0x8] sm:$0xff]
    %v25 = vld [vmem:[#allocation2 + $0x10] sm:$0xff]
    %v26 = vld [vmem:[#allocation2 + $0x18] sm:$0xff]
    %v27 = vld [vmem:[#allocation2 + $0x20] sm:$0xff]
    %v28 = vld [vmem:[#allocation2 + $0x28] sm:$0xff]
    %v29 = vld [vmem:[#allocation2 + $0x30] sm:$0xff]
    %v30 = vld [vmem:[#allocation2 + $0x38] sm:$0xff]
    %v31 = vld [vmem:[#allocation2 + $0x40] sm:$0xff]
    %v32 = vld [vmem:[#allocation2 + $0x48] sm:$0xff]
    %v33 = vld [vmem:[#allocation2 + $0x50] sm:$0xff]
    %v34 = vld [vmem:[#allocation2 + $0x58] sm:$0xff]
    %v35 = vld [vmem:[#allocation2 + $0x60] sm:$0xff]
    %v36 = vld [vmem:[#allocation2 + $0x68] sm:$0xff]
    %v37 = vld [vmem:[#allocation2 + $0x70] sm:$0xff]
    %v38 = vld [vmem:[#allocation2 + $0x78] sm:$0xff]
    %vm39 = vcmask 154624
    %v40 = vsel %vm39, %v24, 0.0
    %v41 = vadd.f32 %v23, %v40
    %42 = vadd.xlane.f32.xlu0 %v41
    %v43 = vpop.xlane.xlu0 %42
    %v44 = vsel %vm39, %v26, 0.0
    %v45 = vadd.f32 %v25, %v44
    %46 = vadd.xlane.f32.xlu0 %v45
    %v47 = vpop.xlane.xlu0 %46
    %v48 = vsel %vm39, %v28, 0.0
    %v49 = vadd.f32 %v27, %v48
    %50 = vadd.xlane.f32.xlu0 %v49
    %v51 = vpop.xlane.xlu0 %50
    %v52 = vsel %vm39, %v30, 0.0
    %v53 = vadd.f32 %v29, %v52
    %54 = vadd.xlane.f32.xlu0 %v53
    %v55 = vpop.xlane.xlu0 %54
    %v56 = vsel %vm39, %v32, 0.0
    %v57 = vadd.f32 %v31, %v56
    %58 = vadd.xlane.f32.xlu0 %v57
    %v59 = vpop.xlane.xlu0 %58
    %v60 = vsel %vm39, %v34, 0.0
    %v61 = vadd.f32 %v33, %v60
    %62 = vadd.xlane.f32.xlu0 %v61
    %v63 = vpop.xlane.xlu0 %62
    %v64 = vsel %vm39, %v36, 0.0
    %v65 = vadd.f32 %v35, %v64
    %66 = vadd.xlane.f32.xlu0 %v65
    %v67 = vpop.xlane.xlu0 %66
    %v68 = vsel %vm39, %v38, 0.0
    %v69 = vadd.f32 %v37, %v68
    %70 = vadd.xlane.f32.xlu0 %v69
    %v71 = vpop.xlane.xlu0 %70
    %v72 = vrcp.pop 147.0
    %v73 = vmul.f32 %v43, %v72
    %v74 = vmul.f32 %v47, %v72
    %v75 = vmul.f32 %v51, %v72
    %v76 = vmul.f32 %v55, %v72
    %v77 = vmul.f32 %v59, %v72
    %v78 = vmul.f32 %v63, %v72
    %v79 = vmul.f32 %v67, %v72
    %v80 = vmul.f32 %v71, %v72
    %v81 = vsub.f32 %v23, %v73
    %v82 = vsub.f32 %v24, %v73
    %v83 = vsub.f32 %v25, %v74
    %v84 = vsub.f32 %v26, %v74
    %v85 = vsub.f32 %v27, %v75
    %v86 = vsub.f32 %v28, %v75
    %v87 = vsub.f32 %v29, %v76
    %v88 = vsub.f32 %v30, %v76
    %v89 = vsub.f32 %v31, %v77
    %v90 = vsub.f32 %v32, %v77
    %v91 = vsub.f32 %v33, %v78
    %v92 = vsub.f32 %v34, %v78
    %v93 = vsub.f32 %v35, %v79
    %v94 = vsub.f32 %v36, %v79
    %v95 = vsub.f32 %v37, %v80
    %v96 = vsub.f32 %v38, %v80
    %v97 = vmul.f32 %v81, %v81
    %v98 = vmul.f32 %v82, %v82
    %v99 = vmul.f32 %v83, %v83
    %v100 = vmul.f32 %v84, %v84
    %v101 = vmul.f32 %v85, %v85
    %v102 = vmul.f32 %v86, %v86
    %v103 = vmul.f32 %v87, %v87
    %v104 = vmul.f32 %v88, %v88
    %v105 = vmul.f32 %v89, %v89
    %v106 = vmul.f32 %v90, %v90
    %v107 = vmul.f32 %v91, %v91
    %v108 = vmul.f32 %v92, %v92
    %v109 = vmul.f32 %v93, %v93
    %v110 = vmul.f32 %v94, %v94
    %v111 = vmul.f32 %v95, %v95
    %v112 = vmul.f32 %v96, %v96
    %v113 = vsel %vm39, %v98, 0.0
    %v114 = vadd.f32 %v97, %v113
    %115 = vadd.xlane.f32.xlu0 %v114
    %v116 = vpop.xlane.xlu0 %115
    %v117 = vsel %vm39, %v100, 0.0
    %v118 = vadd.f32 %v99, %v117
    %119 = vadd.xlane.f32.xlu0 %v118
    %v120 = vpop.xlane.xlu0 %119
    %v121 = vsel %vm39, %v102, 0.0
    %v122 = vadd.f32 %v101, %v121
    %123 = vadd.xlane.f32.xlu0 %v122
    %v124 = vpop.xlane.xlu0 %123
    %v125 = vsel %vm39, %v104, 0.0
    %v126 = vadd.f32 %v103, %v125
    %127 = vadd.xlane.f32.xlu0 %v126
    %v128 = vpop.xlane.xlu0 %127
    %v129 = vsel %vm39, %v106, 0.0
    %v130 = vadd.f32 %v105, %v129
    %131 = vadd.xlane.f32.xlu0 %v130
    %v132 = vpop.xlane.xlu0 %131
    %v133 = vsel %vm39, %v108, 0.0
    %v134 = vadd.f32 %v107, %v133
    %135 = vadd.xlane.f32.xlu0 %v134
    %v136 = vpop.xlane.xlu0 %135
    %v137 = vsel %vm39, %v110, 0.0
    %v138 = vadd.f32 %v109, %v137
    %139 = vadd.xlane.f32.xlu0 %v138
    %v140 = vpop.xlane.xlu0 %139
    %v141 = vsel %vm39, %v112, 0.0
    %v142 = vadd.f32 %v111, %v141
    %143 = vadd.xlane.f32.xlu0 %v142
    %v144 = vpop.xlane.xlu0 %143
    %v145 = vmul.f32 %v116, %v72
    %v146 = vmul.f32 %v120, %v72
    %v147 = vmul.f32 %v124, %v72
    %v148 = vmul.f32 %v128, %v72
    %v149 = vmul.f32 %v132, %v72
    %v150 = vmul.f32 %v136, %v72
    %v151 = vmul.f32 %v140, %v72
    %v152 = vmul.f32 %v144, %v72
    %v153 = vadd.f32 %v145, 1e-10
    %v154 = vadd.f32 %v146, 1e-10
    %v155 = vadd.f32 %v147, 1e-10
    %v156 = vadd.f32 %v148, 1e-10
    %v157 = vadd.f32 %v149, 1e-10
    %v158 = vadd.f32 %v150, 1e-10
    %v159 = vadd.f32 %v151, 1e-10
    %v160 = vadd.f32 %v152, 1e-10
    %v161 = vrsqrt.pop %v153
    %v162 = vmul.f32 %v153, %v161
    %vm163 = vcmp.eq.f32.partialorder %v153, inf
    %v164 = vsel %vm163, %v153, %v162
    %vm165 = vcmp.eq.f32.partialorder %v153, 0.0
    %v166 = vand.u32 %v153, 2147483648
    %v167 = vsel %vm165, %v166, %v164
    %v168 = vrsqrt.pop %v154
    %v169 = vmul.f32 %v154, %v168
    %vm170 = vcmp.eq.f32.partialorder %v154, inf
    %v171 = vsel %vm170, %v154, %v169
    %vm172 = vcmp.eq.f32.partialorder %v154, 0.0
    %v173 = vand.u32 %v154, 2147483648
    %v174 = vsel %vm172, %v173, %v171
    %v175 = vrsqrt.pop %v155
    %v176 = vmul.f32 %v155, %v175
    %vm177 = vcmp.eq.f32.partialorder %v155, inf
    %v178 = vsel %vm177, %v155, %v176
    %vm179 = vcmp.eq.f32.partialorder %v155, 0.0
    %v180 = vand.u32 %v155, 2147483648
    %v181 = vsel %vm179, %v180, %v178
    %v182 = vrsqrt.pop %v156
    %v183 = vmul.f32 %v156, %v182
    %vm184 = vcmp.eq.f32.partialorder %v156, inf
    %v185 = vsel %vm184, %v156, %v183
    %vm186 = vcmp.eq.f32.partialorder %v156, 0.0
    %v187 = vand.u32 %v156, 2147483648
    %v188 = vsel %vm186, %v187, %v185
    %v189 = vrsqrt.pop %v157
    %v190 = vmul.f32 %v157, %v189
    %vm191 = vcmp.eq.f32.partialorder %v157, inf
    %v192 = vsel %vm191, %v157, %v190
    %vm193 = vcmp.eq.f32.partialorder %v157, 0.0
    %v194 = vand.u32 %v157, 2147483648
    %v195 = vsel %vm193, %v194, %v192
    %v196 = vrsqrt.pop %v158
    %v197 = vmul.f32 %v158, %v196
    %vm198 = vcmp.eq.f32.partialorder %v158, inf
    %v199 = vsel %vm198, %v158, %v197
    %vm200 = vcmp.eq.f32.partialorder %v158, 0.0
    %v201 = vand.u32 %v158, 2147483648
    %v202 = vsel %vm200, %v201, %v199
    %v203 = vrsqrt.pop %v159
    %v204 = vmul.f32 %v159, %v203
    %vm205 = vcmp.eq.f32.partialorder %v159, inf
    %v206 = vsel %vm205, %v159, %v204
    %vm207 = vcmp.eq.f32.partialorder %v159, 0.0
    %v208 = vand.u32 %v159, 2147483648
    %v209 = vsel %vm207, %v208, %v206
    %v210 = vrsqrt.pop %v160
    %v211 = vmul.f32 %v160, %v210
    %vm212 = vcmp.eq.f32.partialorder %v160, inf
    %v213 = vsel %vm212, %v160, %v211
    %vm214 = vcmp.eq.f32.partialorder %v160, 0.0
    %v215 = vand.u32 %v160, 2147483648
    %v216 = vsel %vm214, %v215, %v213
    %v217 = vrcp.pop %v167
    %v218 = vmul.f32 %v81, %v217
    %v219 = vmul.f32 %v82, %v217
    %v220 = vrcp.pop %v174
    %v221 = vmul.f32 %v83, %v220
    %v222 = vmul.f32 %v84, %v220
    %v223 = vrcp.pop %v181
    %v224 = vmul.f32 %v85, %v223
    %v225 = vmul.f32 %v86, %v223
    %v226 = vrcp.pop %v188
    %v227 = vmul.f32 %v87, %v226
    %v228 = vmul.f32 %v88, %v226
    %v229 = vrcp.pop %v195
    %v230 = vmul.f32 %v89, %v229
    %v231 = vmul.f32 %v90, %v229
    %v232 = vrcp.pop %v202
    %v233 = vmul.f32 %v91, %v232
    %v234 = vmul.f32 %v92, %v232
    %v235 = vrcp.pop %v209
    %v236 = vmul.f32 %v93, %v235
    %v237 = vmul.f32 %v94, %v235
    %v238 = vrcp.pop %v216
    %v239 = vmul.f32 %v95, %v238
    %v240 = vmul.f32 %v96, %v238
    %241 = vst [vmem:[#allocation5] sm:$0xff] %v218
    %242 = vst.msk [vmem:[#allocation5 + $0x8] sm:$0xff] %vm39, %v219
    %243 = vst [vmem:[#allocation5 + $0x10] sm:$0xff] %v221
    %244 = vst.msk [vmem:[#allocation5 + $0x18] sm:$0xff] %vm39, %v222
    %245 = vst [vmem:[#allocation5 + $0x20] sm:$0xff] %v224
    %246 = vst.msk [vmem:[#allocation5 + $0x28] sm:$0xff] %vm39, %v225
    %247 = vst [vmem:[#allocation5 + $0x30] sm:$0xff] %v227
    %248 = vst.msk [vmem:[#allocation5 + $0x38] sm:$0xff] %vm39, %v228
    %249 = vst [vmem:[#allocation5 + $0x40] sm:$0xff] %v230
    %250 = vst.msk [vmem:[#allocation5 + $0x48] sm:$0xff] %vm39, %v231
    %251 = vst [vmem:[#allocation5 + $0x50] sm:$0xff] %v233
    %252 = vst.msk [vmem:[#allocation5 + $0x58] sm:$0xff] %vm39, %v234
    %253 = vst [vmem:[#allocation5 + $0x60] sm:$0xff] %v236
    %254 = vst.msk [vmem:[#allocation5 + $0x68] sm:$0xff] %vm39, %v237
    %255 = vst [vmem:[#allocation5 + $0x70] sm:$0xff] %v239
    %256 = vst.msk [vmem:[#allocation5 + $0x78] sm:$0xff] %vm39, %v240
    // Predicated region
    $region10: #{tpu_custom_call.1} parent=1 // pred_check
      _
    $region11: #{tpu_custom_call.1} parent=1 // pred_check_branch
      %258 = sbr.rel (0) target = $region13
    $region12: #{tpu_custom_call.1} parent=1 // pred_region
      %s260 = ssub.s32 2048, 2048
      %261 = vsyncadd [#allocation4], %s260
      %s262 = sshll.u32 [#allocation5], 4
      %s263 = int_to_ptr.vmem [resolvable:$true] %s262
      %268 = dma.vmem_to_hbm [thread:$0]  %s263, 2048, %s1, [#allocation4], 256, 256, 16
    $region13: #{tpu_custom_call.1} parent=1 // pred_fallthru
      _
    // Predicated region
    $region14: #{tpu_custom_call.1} parent=1 // pred_check
      _
    $region15: #{tpu_custom_call.1} parent=1 // pred_check_branch
      %270 = sbr.rel (0) target = $region17
    $region16: #{tpu_custom_call.1} parent=1 // pred_region
      %271 = dma.done [#allocation4], 2048
    $region17: #{tpu_custom_call.1} parent=1 // pred_fallthru
      _
    %272 = vsyncpa [#allocation3], 1
    %273 = vsyncpa [#allocation4], 1

</llo_original>
